<compile_context>
chip_gen: v5e
topology: v5e:2x2
jax: 0.10.0
libtpu: 0.0.40
codegen_flags: <defaults>
</compile_context>

<pallas_src>
import jax
import jax.numpy as jnp
from jax.experimental import pallas as pl
from jax.experimental.pallas import tpu as pltpu

_LANE_WIDTH = 384   # lcm(3, 128): lane-dense AND aligned to the xyz channel period
_ROW_TILE = 1024    # 1024 x 384 x 4B = 1.5 MiB per block


def _warp_kernel(coord_ref, scale_ref, trans_ref, out_ref):
    # Elementwise FMA; scale/trans are (1, W) resident slabs broadcast over rows.
    out_ref[...] = (coord_ref[...] * scale_ref[...] + trans_ref[...]).astype(out_ref.dtype)


def uniform_box_warp(coordinates, scale_factor, trans_factor):
    """coordinates: (..., 3); scale_factor / trans_factor: (1, 3) float32."""
    orig_shape = coordinates.shape
    assert orig_shape[-1] == 3, "last dim must be 3 (xyz)"
    dtype = coordinates.dtype

    flat = coordinates.reshape(-1)   # free reshape (contiguous)
    n = flat.shape[0]                # always a multiple of 3

    w = _LANE_WIDTH
    n_pad = ((n + w - 1) // w) * w
    if n_pad != n:
        # Only extra HBM pass; skipped entirely when numel is already 384-aligned.
        flat = jnp.pad(flat, (0, n_pad - n))
    m = n_pad // w
    coords2d = flat.reshape(m, w)

    # Row tile: as large as possible but never larger than M (block dim == full
    # array dim is always legal, even when M is not a multiple of 8).
    row_tile = _ROW_TILE if m >= _ROW_TILE else m
    num_blocks = pl.cdiv(m, row_tile)

    # Pre-tile scale/trans into lane-dense (1, W) slabs: [s0,s1,s2,s0,s1,s2,...]
    reps = w // 3
    scale_slab = jnp.tile(jnp.asarray(scale_factor, jnp.float32).reshape(3), reps).reshape(1, w)
    trans_slab = jnp.tile(jnp.asarray(trans_factor, jnp.float32).reshape(3), reps).reshape(1, w)

    itemsize = jnp.dtype(dtype).itemsize
    cost = pl.CostEstimate(flops=2 * n, transcendentals=0,
                           bytes_accessed=2 * n * itemsize)

    out2d = pl.pallas_call(
        _warp_kernel,
        out_shape=jax.ShapeDtypeStruct((m, w), dtype),
        grid=(num_blocks,),
        in_specs=[
            pl.BlockSpec((row_tile, w), lambda i: (i, 0)),
            pl.BlockSpec((1, w), lambda i: (0, 0)),   # resident: block index never changes
            pl.BlockSpec((1, w), lambda i: (0, 0)),
        ],
        out_specs=pl.BlockSpec((row_tile, w), lambda i: (i, 0)),
        compiler_params=pltpu.CompilerParams(
            dimension_semantics=("parallel",),
        ),
        cost_estimate=cost,
    )(coords2d, scale_slab, trans_slab)

    out_flat = out2d.reshape(-1)
    if n_pad != n:
        out_flat = out_flat[:n]
    return out_flat.reshape(orig_shape)


class UniformBoxWarpNew:
    """JAX/Pallas port of UniformBoxWarp_new (forward pass)."""

    def __init__(self, scales, trans):
        self.scale_factor = jnp.asarray(scales, dtype=jnp.float32).reshape(1, 3)
        self.trans_factor = jnp.asarray(trans, dtype=jnp.float32).reshape(1, 3)

    def forward(self, coordinates):
        return uniform_box_warp(coordinates, self.scale_factor, self.trans_factor)

    def inv_trans(self, coordinates):
        # Plain JAX helper (tiny op; not on the hot path).
        return (jnp.asarray(coordinates) - self.trans_factor) / self.scale_factor

    __call__ = forward


if __name__ == "__main__":
    key = jax.random.PRNGKey(0)
    B, N = 2, 16
    coords = jax.random.normal(key, (B, N, 3), dtype=jnp.float32)

    scales = [2.0, 0.5, 1.25]
    trans = [0.1, -0.2, 0.3]

    module = UniformBoxWarpNew(scales, trans)
    out = module(coords)
    out = jax.block_until_ready(out)

    ref = coords * jnp.asarray(scales, jnp.float32).reshape(1, 1, 3) + \
          jnp.asarray(trans, jnp.float32).reshape(1, 1, 3)
    assert out.shape == coords.shape
    assert out.dtype == coords.dtype
    assert jnp.allclose(out, ref, atol=1e-6), "mismatch vs reference"

    print("KERNEL_OK")
</pallas_src>

<mosaic_0001>
module attributes {stable_mosaic.version = 11 : i64} {
  func.func @_warp_kernel(%arg0: i32, %arg1: memref<1x384xf32, #tpu.memory_space<vmem>>, %arg2: memref<1x384xf32, #tpu.memory_space<vmem>>, %arg3: memref<1x384xf32, #tpu.memory_space<vmem>>, %arg4: memref<1x384xf32, #tpu.memory_space<vmem>>) attributes {dimension_semantics = [#tpu.dimension_semantics<parallel>], iteration_bounds = array<i64: 1>, scalar_prefetch = 0 : i64, scratch_operands = 0 : i64, tpu.core_type = #tpu.core_type<tc>, window_params = [{transform_indices = @transform_0, window_bounds = array<i64: 1, 384>}, {pipeline_mode = #tpu.pipeline_mode<synchronous>, transform_indices = @transform_1, window_bounds = array<i64: 1, 384>}, {pipeline_mode = #tpu.pipeline_mode<synchronous>, transform_indices = @transform_2, window_bounds = array<i64: 1, 384>}, {transform_indices = @transform_3, window_bounds = array<i64: 1, 384>}]} {
    %c0 = arith.constant 0 : index
    %c0_0 = arith.constant 0 : index
    %0 = vector.load %arg1[%c0, %c0_0] : memref<1x384xf32, #tpu.memory_space<vmem>>, vector<1x384xf32>
    %c0_1 = arith.constant 0 : index
    %c0_2 = arith.constant 0 : index
    %1 = vector.load %arg2[%c0_1, %c0_2] : memref<1x384xf32, #tpu.memory_space<vmem>>, vector<1x384xf32>
    %2 = arith.mulf %0, %1 : vector<1x384xf32>
    %c0_3 = arith.constant 0 : index
    %c0_4 = arith.constant 0 : index
    %3 = vector.load %arg3[%c0_3, %c0_4] : memref<1x384xf32, #tpu.memory_space<vmem>>, vector<1x384xf32>
    %4 = arith.addf %2, %3 : vector<1x384xf32>
    %c0_5 = arith.constant 0 : index
    %c0_6 = arith.constant 0 : index
    %5 = vector.load %arg4[%c0_5, %c0_6] : memref<1x384xf32, #tpu.memory_space<vmem>>, vector<1x384xf32>
    tpu.vector_store %arg4[%c0_5, %c0_6], %4 {strides = array<i32>} : memref<1x384xf32, #tpu.memory_space<vmem>>, vector<1x384xf32>,
    return
  }
  func.func @transform_0(%arg0: i32) -> (i32, i32) {
    %c0_i32 = arith.constant 0 : i32
    %c0_i32_0 = arith.constant 0 : i32
    return %arg0, %c0_i32 : i32, i32
  }
  func.func @transform_1(%arg0: i32) -> (i32, i32) {
    %c0_i32 = arith.constant 0 : i32
    %c0_i32_0 = arith.constant 0 : i32
    %c0_i32_1 = arith.constant 0 : i32
    return %c0_i32, %c0_i32_0 : i32, i32
  }
  func.func @transform_2(%arg0: i32) -> (i32, i32) {
    %c0_i32 = arith.constant 0 : i32
    %c0_i32_0 = arith.constant 0 : i32
    %c0_i32_1 = arith.constant 0 : i32
    return %c0_i32, %c0_i32_0 : i32, i32
  }
  func.func @transform_3(%arg0: i32) -> (i32, i32) {
    %c0_i32 = arith.constant 0 : i32
    %c0_i32_0 = arith.constant 0 : i32
    return %arg0, %c0_i32 : i32, i32
  }
}

</mosaic_0001>

<llo_original>
// kernel: tpu_custom_call.1
$region0: #{tpu_custom_call.1}
  #allocation0 [shape = 'u32[]', space=smem, size = 0x4, offset = 0x4, fixed_abs, tag = 'smem constant byte address 0x4 - core index']
  #allocation1 [shape = 'u32[72,128]{1,0:T(1,128)}', space=vmem, size = 0x9000, scoped, tag = 'internal scratch']
  %s0 = inlined_call_operand.hbm [shape: f32[1,384], index: 0, kind: input, shape index: {}]
  %s1 = inlined_call_operand.hbm [shape: f32[1,384], index: 1, kind: input, shape index: {}]
  %s2 = inlined_call_operand.hbm [shape: f32[1,384], index: 2, kind: input, shape index: {}]
  %s3 = inlined_call_operand.hbm [shape: f32[1,384], index: 3, kind: output, shape index: {}]
  %s4 = sld [smem:[#allocation0]]
  $region34: #{tpu_custom_call.1} parent=0
    _
  %s6 = ssub.s32 1, %s4
  %s7 = scalar_select 0, %s6, %s4
  $region1: #{tpu_custom_call.1} parent=0
    #allocation2 [shape = 'u8[1536]{0}', space=vmem, size = 0x800, scoped, tag = 'input window, operand 0, single buffered']
    #allocation3 [shape = 's32[1]{0}', space=sflag, size = 0x4, scoped, tag = 'scoped memory for tpu_custom_call.1']
    #allocation4 [shape = 's32[1]{0}', space=sflag, size = 0x4, scoped, tag = 'scoped memory for tpu_custom_call.1']
    #allocation5 [shape = 'u8[1536]{0}', space=vmem, size = 0x800, scoped, tag = 'input window, operand 1, single buffered']
    #allocation6 [shape = 's32[1]{0}', space=sflag, size = 0x4, scoped, tag = 'scoped memory for tpu_custom_call.1']
    #allocation7 [shape = 'u8[1536]{0}', space=vmem, size = 0x800, scoped, tag = 'input window, operand 2, single buffered']
    #allocation8 [shape = 'u8[1536]{0}', space=vmem, size = 0x800, scoped, tag = 'output window, operand 0, single buffered']
    %8 = vsyncpa [#allocation3], 0
    %9 = vsyncpa [#allocation6], 0
    %10 = vsyncpa [#allocation4], 0
    // Predicated region
    $region2: #{tpu_custom_call.1} parent=1 // pred_check
      _
    $region3: #{tpu_custom_call.1} parent=1 // pred_check_branch
      %12 = sbr.rel (0) target = $region5
    $region4: #{tpu_custom_call.1} parent=1 // pred_region
      %14 = vsyncadd [#allocation3], 0
      %s16 = sshll.u32 %s0, 4
      %s17 = int_to_ptr.hbm [resolvable:$true] %s16
      %s18 = sshll.u32 [#allocation2], 4
      %s19 = int_to_ptr.vmem [resolvable:$true] %s18
      %21 = dma.hbm_to_vmem [thread:$0]  %s17, 48, %s19, [#allocation3]
    $region5: #{tpu_custom_call.1} parent=1 // pred_fallthru
      _
    // Predicated region
    $region6: #{tpu_custom_call.1} parent=1 // pred_check
      _
    $region7: #{tpu_custom_call.1} parent=1 // pred_check_branch
      %23 = sbr.rel (0) target = $region9
    $region8: #{tpu_custom_call.1} parent=1 // pred_region
      %25 = vsyncadd [#allocation6], 0
      %s27 = sshll.u32 %s1, 4
      %s28 = int_to_ptr.hbm [resolvable:$true] %s27
      %s29 = sshll.u32 [#allocation5], 4
      %s30 = int_to_ptr.vmem [resolvable:$true] %s29
      %32 = dma.hbm_to_vmem [thread:$0]  %s28, 48, %s30, [#allocation6]
    $region9: #{tpu_custom_call.1} parent=1 // pred_fallthru
      _
    // Predicated region
    $region10: #{tpu_custom_call.1} parent=1 // pred_check
      _
    $region11: #{tpu_custom_call.1} parent=1 // pred_check_branch
      %34 = sbr.rel (0) target = $region13
    $region12: #{tpu_custom_call.1} parent=1 // pred_region
      %36 = vsyncadd [#allocation6], 0
      %s38 = sshll.u32 %s2, 4
      %s39 = int_to_ptr.hbm [resolvable:$true] %s38
      %s40 = sshll.u32 [#allocation7], 4
      %s41 = int_to_ptr.vmem [resolvable:$true] %s40
      %43 = dma.hbm_to_vmem [thread:$0]  %s39, 48, %s41, [#allocation6]
    $region13: #{tpu_custom_call.1} parent=1 // pred_fallthru
      _
    // Predicated region
    $region14: #{tpu_custom_call.1} parent=1 // pred_check
      _
    $region15: #{tpu_custom_call.1} parent=1 // pred_check_branch
      %45 = sbr.rel (0) target = $region17
    $region16: #{tpu_custom_call.1} parent=1 // pred_region
      %47 = dma.done [#allocation3], 48
    $region17: #{tpu_custom_call.1} parent=1 // pred_fallthru
      _
    // Predicated region
    $region18: #{tpu_custom_call.1} parent=1 // pred_check
      _
    $region19: #{tpu_custom_call.1} parent=1 // pred_check_branch
      %49 = sbr.rel (0) target = $region21
    $region20: #{tpu_custom_call.1} parent=1 // pred_region
      %51 = dma.done [#allocation6], 48
    $region21: #{tpu_custom_call.1} parent=1 // pred_fallthru
      _
    // Predicated region
    $region22: #{tpu_custom_call.1} parent=1 // pred_check
      _
    $region23: #{tpu_custom_call.1} parent=1 // pred_check_branch
      %53 = sbr.rel (0) target = $region25
    $region24: #{tpu_custom_call.1} parent=1 // pred_region
      %55 = dma.done [#allocation6], 48
    $region25: #{tpu_custom_call.1} parent=1 // pred_fallthru
      _
    %v56 = vld [vmem:[#allocation2] sm:$0x7]
    %v57 = vld [vmem:[#allocation5] sm:$0x7]
    %v58 = vmul.f32 %v56, %v57
    %v59 = vld [vmem:[#allocation7] sm:$0x7]
    %v60 = vadd.f32 %v58, %v59
    %v61 = vlaneseq
    %vm62 = vcmp.ge.s32.totalorder %v61, 0
    %vm63 = vcmp.lt.s32.totalorder %v61, 384
    %vm64 = vmand %vm62, %vm63
    %65 = vst.msk [vmem:[#allocation8] sm:$0x7] %vm64, %v60
    // Predicated region
    $region26: #{tpu_custom_call.1} parent=1 // pred_check
      _
    $region27: #{tpu_custom_call.1} parent=1 // pred_check_branch
      %67 = sbr.rel (0) target = $region29
    $region28: #{tpu_custom_call.1} parent=1 // pred_region
      %69 = vsyncadd [#allocation4], 0
      %s71 = sshll.u32 [#allocation8], 4
      %s72 = int_to_ptr.vmem [resolvable:$true] %s71
      %s73 = sshll.u32 %s3, 4
      %s74 = int_to_ptr.hbm [resolvable:$true] %s73
      %76 = dma.vmem_to_hbm [thread:$0]  %s72, 48, %s74, [#allocation4]
    $region29: #{tpu_custom_call.1} parent=1 // pred_fallthru
      _
    // Predicated region
    $region30: #{tpu_custom_call.1} parent=1 // pred_check
      _
    $region31: #{tpu_custom_call.1} parent=1 // pred_check_branch
      %78 = sbr.rel (0) target = $region33
    $region32: #{tpu_custom_call.1} parent=1 // pred_region
      %80 = dma.done [#allocation4], 48
    $region33: #{tpu_custom_call.1} parent=1 // pred_fallthru
      _
    %81 = vsyncpa [#allocation3], 1
    %82 = vsyncpa [#allocation6], 1
    %83 = vsyncpa [#allocation4], 1

</llo_original>
